<compile_context>
chip_gen: v7x
topology: tpu7x:2x2x1
jax: 0.10.0
libtpu: 0.0.40
codegen_flags: <defaults>
</compile_context>

<pallas_src>
import functools

import jax
import jax.numpy as jnp
from jax.experimental import pallas as pl
from jax.experimental.pallas import tpu as pltpu

K = 2       # kernel_size == stride for conv0 / deconv0 / conv1
LANE = 128  # TPU lane width


def _prelu(v, a):
    return jnp.where(v >= 0, v, a * v)


def dpu_kernel(alpha_ref, x_ref, w0_ref, b0_ref, wd_ref, bd_ref, w1_ref, b1_ref, o_ref):
    # alpha_ref: (3,) f32 PReLU slopes in SMEM.
    a0, a1, a2 = alpha_ref[0], alpha_ref[1], alpha_ref[2]

    x = x_ref[...]                                                        # (C4, TP) lane-dense tile
    # conv0 + prelu0:   L0 = prelu(W0 @ X + b0)
    l0 = jnp.dot(w0_ref[...], x, preferred_element_type=jnp.float32) + b0_ref[...]
    l0 = _prelu(l0, a0)                                                   # (C, TP)
    # deconv0 + prelu1: H0 = prelu(Wd @ L0 + bd)   rows ordered (c_out, kh, kw)
    h0 = jnp.dot(wd_ref[...], l0, preferred_element_type=jnp.float32) + bd_ref[...]
    h0 = _prelu(h0, a1)                                                   # (C4, TP)
    # residual
    r = h0 - x
    # conv1 + prelu2:   L1 = prelu(W1 @ r + b1)
    l1 = jnp.dot(w1_ref[...], r, preferred_element_type=jnp.float32) + b1_ref[...]
    l1 = _prelu(l1, a2)                                                   # (C, TP)
    o_ref[...] = (l0 + l1).astype(o_ref.dtype)


def _prepare_params(params, C):
    """Re-lay-out PyTorch-style weights for the patch-major (rows = (c, kh, kw)) matmuls."""
    C4 = C * K * K
    w0 = params["w0"].reshape(C, C4).astype(jnp.float32)          # Conv2d  (Cout, Cin*kh*kw)
    w1 = params["w1"].reshape(C, C4).astype(jnp.float32)
    wd = params["wd"].reshape(C, C4).T.astype(jnp.float32)        # ConvT -> (Cout*kh*kw, Cin)
    b0 = params["b0"].reshape(C, 1).astype(jnp.float32)
    b1 = params["b1"].reshape(C, 1).astype(jnp.float32)
    bd = jnp.repeat(params["bd"], K * K).reshape(C4, 1).astype(jnp.float32)
    alphas = jnp.stack([params["a0"], params["a1"], params["a2"]]).astype(jnp.float32)
    return alphas, w0, b0, wd, bd, w1, b1


def _choose_tile_p(P_pad, max_tile_p):
    """Largest multiple of 128 dividing P_pad (capped); prefer >= 2 grid steps (v7x 2 TCs)."""
    cands = [t for t in range(LANE, min(max_tile_p, P_pad) + 1, LANE) if P_pad % t == 0]
    two_step = [t for t in cands if P_pad // t >= 2]
    return max(two_step if two_step else cands)


def down_projection_unit_patch_major(x_patch, params, *, max_tile_p=16384):
    """Core fused op. x_patch: (C*K*K, P) f32, rows ordered (c, kh, kw). Returns (C, P)."""
    C4, P = x_patch.shape
    C = C4 // (K * K)
    alphas, w0, b0, wd, bd, w1, b1 = _prepare_params(params, C)

    # Pad the patch axis to a multiple of 128 so every tile is lane-dense (padding columns
    # are zeros; their outputs are sliced off below).
    P_pad = ((P + LANE - 1) // LANE) * LANE
    if P_pad != P:
        x_patch = jnp.pad(x_patch, ((0, 0), (0, P_pad - P)))
    tile_p = _choose_tile_p(P_pad, max_tile_p)

    out = pl.pallas_call(
        dpu_kernel,
        out_shape=jax.ShapeDtypeStruct((C, P_pad), jnp.float32),
        grid_spec=pltpu.PrefetchScalarGridSpec(
            num_scalar_prefetch=0,
            grid=(P_pad // tile_p,),
            in_specs=[
                pl.BlockSpec(memory_space=pltpu.SMEM),            # PReLU slopes (3,)
                pl.BlockSpec((C4, tile_p), lambda i: (0, i)),     # X patches (lane-dense)
                pl.BlockSpec((C, C4), lambda i: (0, 0)),          # conv0 weight
                pl.BlockSpec((C, 1), lambda i: (0, 0)),           # conv0 bias (per channel row)
                pl.BlockSpec((C4, C), lambda i: (0, 0)),          # deconv0 weight (transposed)
                pl.BlockSpec((C4, 1), lambda i: (0, 0)),          # deconv0 bias (per (c,kh,kw) row)
                pl.BlockSpec((C, C4), lambda i: (0, 0)),          # conv1 weight
                pl.BlockSpec((C, 1), lambda i: (0, 0)),           # conv1 bias
            ],
            out_specs=pl.BlockSpec((C, tile_p), lambda i: (0, i)),
        ),
        compiler_params=pltpu.CompilerParams(
            dimension_semantics=("parallel",),       # shard patch tiles across TensorCores
            vmem_limit_bytes=32 * 1024 * 1024,       # headroom for large tile_p, <= physical on all chips
        ),
    )(alphas, x_patch, w0, b0, wd, bd, w1, b1)

    return out[:, :P] if P_pad != P else out


def _nchw_to_patches(x):
    """NCHW -> (C*K*K, N*Ho*Wo) with row order (c, kh, kw). Done ONCE at the boundary."""
    N, C, H, W = x.shape
    Ho, Wo = H // K, W // K
    xp = x.reshape(N, C, Ho, K, Wo, K).transpose(1, 3, 5, 0, 2, 4)
    return xp.reshape(C * K * K, N * Ho * Wo), (N, C, Ho, Wo)


@functools.partial(jax.jit, static_argnames=("max_tile_p",))
def down_projection_unit(x, params, *, max_tile_p=16384):
    """NCHW entry point (matches the PyTorch module). Callers that already keep activations
    in patch-major layout should call down_projection_unit_patch_major directly and skip
    the two full-HBM-pass layout transposes below."""
    x_patch, (N, C, Ho, Wo) = _nchw_to_patches(x)
    out = down_projection_unit_patch_major(x_patch, params, max_tile_p=max_tile_p)
    # (C, N*Ho*Wo) -> NCHW
    return out.reshape(C, N, Ho, Wo).transpose(1, 0, 2, 3)


def ref_forward(x, params):
    """Pure-JAX reference matching PyTorch Conv2d/ConvTranspose2d semantics."""
    def conv(x, w, b):
        y = jax.lax.conv_general_dilated(
            x, w, window_strides=(K, K), padding="VALID",
            dimension_numbers=("NCHW", "OIHW", "NCHW"))
        return y + b[None, :, None, None]

    def deconv(x, w, b):
        # ConvTranspose2d(k=K, s=K, p=0) == lhs-dilated conv with flipped, IO-swapped kernel
        y = jax.lax.conv_general_dilated(
            x, jnp.flip(w, (2, 3)).transpose(1, 0, 2, 3),
            window_strides=(1, 1), padding=[(K - 1, K - 1)] * 2,
            lhs_dilation=(K, K),
            dimension_numbers=("NCHW", "OIHW", "NCHW"))
        return y + b[None, :, None, None]

    L0 = _prelu(conv(x, params["w0"], params["b0"]), params["a0"])
    H0 = _prelu(deconv(L0, params["wd"], params["bd"]), params["a1"])
    r = H0 - x
    L1 = _prelu(conv(r, params["w1"], params["b1"]), params["a2"])
    return L0 + L1


if __name__ == "__main__":
    N, C, H, W = 2, 4, 16, 16  # n_r = 4
    key = jax.random.PRNGKey(0)
    k0, k1, k2, k3, k4, k5, kx = jax.random.split(key, 7)
    params = {
        "w0": jax.random.normal(k0, (C, C, K, K), jnp.float32) * 0.2,  # Conv2d(n_r, n_r, 2, 2)
        "b0": jax.random.normal(k1, (C,), jnp.float32) * 0.1,
        "wd": jax.random.normal(k2, (C, C, K, K), jnp.float32) * 0.2,  # ConvTranspose2d(n_r, n_r, 2, 2)
        "bd": jax.random.normal(k3, (C,), jnp.float32) * 0.1,
        "w1": jax.random.normal(k4, (C, C, K, K), jnp.float32) * 0.2,  # Conv2d(n_r, n_r, 2, 2)
        "b1": jax.random.normal(k5, (C,), jnp.float32) * 0.1,
        "a0": jnp.float32(0.25),  # PReLU default init
        "a1": jnp.float32(0.25),
        "a2": jnp.float32(0.25),
    }
    x = jax.random.normal(kx, (N, C, H, W), jnp.float32)

    out = down_projection_unit(x, params)
    out = jax.block_until_ready(out)

    ref = ref_forward(x, params)
    assert out.shape == (N, C, H // 2, W // 2), out.shape
    max_err = float(jnp.max(jnp.abs(out - ref)))
    assert jnp.allclose(out, ref, atol=1e-4, rtol=1e-4), max_err
    print("KERNEL_OK")
</pallas_src>

<mosaic_0001>
module attributes {stable_mosaic.version = 11 : i64} {
  func.func @dpu_kernel(%arg0: i32, %arg1: memref<3xf32, #tpu.memory_space<smem>>, %arg2: memref<16x128xf32, #tpu.memory_space<vmem>>, %arg3: memref<4x16xf32, #tpu.memory_space<vmem>>, %arg4: memref<4x1xf32, #tpu.memory_space<vmem>>, %arg5: memref<16x4xf32, #tpu.memory_space<vmem>>, %arg6: memref<16x1xf32, #tpu.memory_space<vmem>>, %arg7: memref<4x16xf32, #tpu.memory_space<vmem>>, %arg8: memref<4x1xf32, #tpu.memory_space<vmem>>, %arg9: memref<4x128xf32, #tpu.memory_space<vmem>>) attributes {dimension_semantics = [#tpu.dimension_semantics<parallel>], iteration_bounds = array<i64: 1>, scalar_prefetch = 0 : i64, scratch_operands = 0 : i64, tpu.core_type = #tpu.core_type<tc>, window_params = [{transform_indices = @transform_0, window_bounds = array<i64: 3>}, {transform_indices = @transform_1, window_bounds = array<i64: 16, 128>}, {pipeline_mode = #tpu.pipeline_mode<synchronous>, transform_indices = @transform_2, window_bounds = array<i64: 4, 16>}, {pipeline_mode = #tpu.pipeline_mode<synchronous>, transform_indices = @transform_3, window_bounds = array<i64: 4, 1>}, {pipeline_mode = #tpu.pipeline_mode<synchronous>, transform_indices = @transform_4, window_bounds = array<i64: 16, 4>}, {pipeline_mode = #tpu.pipeline_mode<synchronous>, transform_indices = @transform_5, window_bounds = array<i64: 16, 1>}, {pipeline_mode = #tpu.pipeline_mode<synchronous>, transform_indices = @transform_6, window_bounds = array<i64: 4, 16>}, {pipeline_mode = #tpu.pipeline_mode<synchronous>, transform_indices = @transform_7, window_bounds = array<i64: 4, 1>}, {transform_indices = @transform_8, window_bounds = array<i64: 4, 128>}]} {
    %c0 = arith.constant 0 : index
    %0 = memref.load %arg1[%c0] : memref<3xf32, #tpu.memory_space<smem>>
    %c1 = arith.constant 1 : index
    %1 = memref.load %arg1[%c1] : memref<3xf32, #tpu.memory_space<smem>>
    %c2 = arith.constant 2 : index
    %2 = memref.load %arg1[%c2] : memref<3xf32, #tpu.memory_space<smem>>
    %c0_0 = arith.constant 0 : index
    %c0_1 = arith.constant 0 : index
    %3 = vector.load %arg2[%c0_0, %c0_1] : memref<16x128xf32, #tpu.memory_space<vmem>>, vector<16x128xf32>
    %c0_2 = arith.constant 0 : index
    %c0_3 = arith.constant 0 : index
    %4 = vector.load %arg3[%c0_2, %c0_3] : memref<4x16xf32, #tpu.memory_space<vmem>>, vector<4x16xf32>
    %cst = arith.constant dense<0.000000e+00> : vector<4x128xf32>
    %5 = tpu.matmul %4, %3, %cst {dimension_numbers = #tpu.dot_dimension_numbers<[1], [0], [0], [1], [0, 0, 1, 1], [], []>} : vector<4x16xf32>, vector<16x128xf32>, vector<4x128xf32> -> vector<4x128xf32>
    %c0_4 = arith.constant 0 : index
    %c0_5 = arith.constant 0 : index
    %6 = vector.load %arg4[%c0_4, %c0_5] : memref<4x1xf32, #tpu.memory_space<vmem>>, vector<4x1xf32>
    %7 = vector.broadcast %6 : vector<4x1xf32> to vector<4x128xf32>
    %8 = arith.addf %5, %7 : vector<4x128xf32>
    %cst_6 = arith.constant 0.000000e+00 : f32
    %9 = vector.broadcast %cst_6 : f32 to vector<4x128xf32>
    %10 = arith.cmpf oge, %8, %9 : vector<4x128xf32>
    %11 = vector.broadcast %0 : f32 to vector<4x128xf32>
    %12 = arith.mulf %11, %8 : vector<4x128xf32>
    %13 = arith.select %10, %8, %12 : vector<4x128xi1>, vector<4x128xf32>
    %c0_7 = arith.constant 0 : index
    %c0_8 = arith.constant 0 : index
    %14 = vector.load %arg5[%c0_7, %c0_8] : memref<16x4xf32, #tpu.memory_space<vmem>>, vector<16x4xf32>
    %cst_9 = arith.constant dense<0.000000e+00> : vector<16x128xf32>
    %15 = tpu.matmul %14, %13, %cst_9 {dimension_numbers = #tpu.dot_dimension_numbers<[1], [0], [0], [1], [0, 0, 1, 1], [], []>} : vector<16x4xf32>, vector<4x128xf32>, vector<16x128xf32> -> vector<16x128xf32>
    %c0_10 = arith.constant 0 : index
    %c0_11 = arith.constant 0 : index
    %16 = vector.load %arg6[%c0_10, %c0_11] : memref<16x1xf32, #tpu.memory_space<vmem>>, vector<16x1xf32>
    %17 = vector.broadcast %16 : vector<16x1xf32> to vector<16x128xf32>
    %18 = arith.addf %15, %17 : vector<16x128xf32>
    %cst_12 = arith.constant 0.000000e+00 : f32
    %19 = vector.broadcast %cst_12 : f32 to vector<16x128xf32>
    %20 = arith.cmpf oge, %18, %19 : vector<16x128xf32>
    %21 = vector.broadcast %1 : f32 to vector<16x128xf32>
    %22 = arith.mulf %21, %18 : vector<16x128xf32>
    %23 = arith.select %20, %18, %22 : vector<16x128xi1>, vector<16x128xf32>
    %24 = arith.subf %23, %3 : vector<16x128xf32>
    %c0_13 = arith.constant 0 : index
    %c0_14 = arith.constant 0 : index
    %25 = vector.load %arg7[%c0_13, %c0_14] : memref<4x16xf32, #tpu.memory_space<vmem>>, vector<4x16xf32>
    %cst_15 = arith.constant dense<0.000000e+00> : vector<4x128xf32>
    %26 = tpu.matmul %25, %24, %cst_15 {dimension_numbers = #tpu.dot_dimension_numbers<[1], [0], [0], [1], [0, 0, 1, 1], [], []>} : vector<4x16xf32>, vector<16x128xf32>, vector<4x128xf32> -> vector<4x128xf32>
    %c0_16 = arith.constant 0 : index
    %c0_17 = arith.constant 0 : index
    %27 = vector.load %arg8[%c0_16, %c0_17] : memref<4x1xf32, #tpu.memory_space<vmem>>, vector<4x1xf32>
    %28 = vector.broadcast %27 : vector<4x1xf32> to vector<4x128xf32>
    %29 = arith.addf %26, %28 : vector<4x128xf32>
    %cst_18 = arith.constant 0.000000e+00 : f32
    %30 = vector.broadcast %cst_18 : f32 to vector<4x128xf32>
    %31 = arith.cmpf oge, %29, %30 : vector<4x128xf32>
    %32 = vector.broadcast %2 : f32 to vector<4x128xf32>
    %33 = arith.mulf %32, %29 : vector<4x128xf32>
    %34 = arith.select %31, %29, %33 : vector<4x128xi1>, vector<4x128xf32>
    %35 = arith.addf %13, %34 : vector<4x128xf32>
    %c0_19 = arith.constant 0 : index
    %c0_20 = arith.constant 0 : index
    %36 = vector.load %arg9[%c0_19, %c0_20] : memref<4x128xf32, #tpu.memory_space<vmem>>, vector<4x128xf32>
    tpu.vector_store %arg9[%c0_19, %c0_20], %35 {strides = array<i32>} : memref<4x128xf32, #tpu.memory_space<vmem>>, vector<4x128xf32>,
    return
  }
  func.func @transform_0(%arg0: i32) -> i32 {
    %c0_i32 = arith.constant 0 : i32
    %c0_i32_0 = arith.constant 0 : i32
    return %c0_i32 : i32
  }
  func.func @transform_1(%arg0: i32) -> (i32, i32) {
    %c0_i32 = arith.constant 0 : i32
    %c0_i32_0 = arith.constant 0 : i32
    return %c0_i32, %arg0 : i32, i32
  }
  func.func @transform_2(%arg0: i32) -> (i32, i32) {
    %c0_i32 = arith.constant 0 : i32
    %c0_i32_0 = arith.constant 0 : i32
    %c0_i32_1 = arith.constant 0 : i32
    return %c0_i32, %c0_i32_0 : i32, i32
  }
  func.func @transform_3(%arg0: i32) -> (i32, i32) {
    %c0_i32 = arith.constant 0 : i32
    %c0_i32_0 = arith.constant 0 : i32
    %c0_i32_1 = arith.constant 0 : i32
    return %c0_i32, %c0_i32_0 : i32, i32
  }
  func.func @transform_4(%arg0: i32) -> (i32, i32) {
    %c0_i32 = arith.constant 0 : i32
    %c0_i32_0 = arith.constant 0 : i32
    %c0_i32_1 = arith.constant 0 : i32
    return %c0_i32, %c0_i32_0 : i32, i32
  }
  func.func @transform_5(%arg0: i32) -> (i32, i32) {
    %c0_i32 = arith.constant 0 : i32
    %c0_i32_0 = arith.constant 0 : i32
    %c0_i32_1 = arith.constant 0 : i32
    return %c0_i32, %c0_i32_0 : i32, i32
  }
  func.func @transform_6(%arg0: i32) -> (i32, i32) {
    %c0_i32 = arith.constant 0 : i32
    %c0_i32_0 = arith.constant 0 : i32
    %c0_i32_1 = arith.constant 0 : i32
    return %c0_i32, %c0_i32_0 : i32, i32
  }
  func.func @transform_7(%arg0: i32) -> (i32, i32) {
    %c0_i32 = arith.constant 0 : i32
    %c0_i32_0 = arith.constant 0 : i32
    %c0_i32_1 = arith.constant 0 : i32
    return %c0_i32, %c0_i32_0 : i32, i32
  }
  func.func @transform_8(%arg0: i32) -> (i32, i32) {
    %c0_i32 = arith.constant 0 : i32
    %c0_i32_0 = arith.constant 0 : i32
    return %c0_i32, %arg0 : i32, i32
  }
}

</mosaic_0001>

<llo_original>
// kernel: down_projection_unit.1
$region0: #{down_projection_unit.1}
  #allocation0 [shape = 'u32[]', space=smem, size = 0x4, offset = 0x4, fixed_abs, tag = 'smem constant byte address 0x4 - core index']
  #allocation1 [shape = 'u32[144,128]{1,0:T(1,128)}', space=vmem, size = 0x12000, scoped, tag = 'internal scratch']
  %s0 = inlined_call_operand.vmem [shape: f32[3], index: 0, kind: input, shape index: {}]
  %s1 = inlined_call_operand.vmem [shape: f32[16,128], index: 1, kind: input, shape index: {}]
  %s2 = inlined_call_operand.vmem [shape: f32[4,16], index: 2, kind: input, shape index: {}]
  %s3 = inlined_call_operand.vmem [shape: f32[4,1], index: 3, kind: input, shape index: {}]
  %s4 = inlined_call_operand.vmem [shape: f32[16,4], index: 4, kind: input, shape index: {}]
  %s5 = inlined_call_operand.vmem [shape: f32[16,1], index: 5, kind: input, shape index: {}]
  %s6 = inlined_call_operand.vmem [shape: f32[4,16], index: 6, kind: input, shape index: {}]
  %s7 = inlined_call_operand.vmem [shape: f32[4,1], index: 7, kind: input, shape index: {}]
  %s8 = inlined_call_operand.vmem [shape: f32[4,128], index: 8, kind: output, shape index: {}]
  %s9 = sld [smem:[#allocation0]]
  $region46: #{down_projection_unit.1} parent=0
    _
  %s11 = ssub.s32 1, %s9
  %s12 = scalar_select 0, %s11, %s9
  $region1: #{down_projection_unit.1} parent=0
    #allocation2 [shape = 'u8[512]{0}', space=smem, size = 0x200, scoped, tag = 'input window, operand 0, single buffered']
    #allocation3 [shape = 's32[1]{0}', space=sflag, size = 0x4, scoped, tag = 'scoped memory for down_projection_unit.1']
    %13 = vsyncpa [#allocation3], 0
    // Predicated region
    $region2: #{down_projection_unit.1} parent=1 // pred_check
      _
    $region3: #{down_projection_unit.1} parent=1 // pred_check_branch
      %15 = sbr.rel (0) target = $region5
    $region4: #{down_projection_unit.1} parent=1 // pred_region
      %s17 = ssub.s32 16, 16
      %18 = vsyncadd [#allocation3], %s17
      %s20 = sshll.u32 %s0, 4
      %s21 = int_to_ptr.vmem [resolvable:$true] %s20
      %23 = dma.vmem_to_smem %s21, 16, [#allocation2], [#allocation3]
    $region5: #{down_projection_unit.1} parent=1 // pred_fallthru
      _
    // Predicated region
    $region6: #{down_projection_unit.1} parent=1 // pred_check
      _
    $region7: #{down_projection_unit.1} parent=1 // pred_check_branch
      %25 = sbr.rel (0) target = $region9
    $region8: #{down_projection_unit.1} parent=1 // pred_region
      _
    $region9: #{down_projection_unit.1} parent=1 // pred_fallthru
      _
    // Predicated region
    $region10: #{down_projection_unit.1} parent=1 // pred_check
      _
    $region11: #{down_projection_unit.1} parent=1 // pred_check_branch
      %27 = sbr.rel (0) target = $region13
    $region12: #{down_projection_unit.1} parent=1 // pred_region
      _
    $region13: #{down_projection_unit.1} parent=1 // pred_fallthru
      _
    // Predicated region
    $region14: #{down_projection_unit.1} parent=1 // pred_check
      _
    $region15: #{down_projection_unit.1} parent=1 // pred_check_branch
      %29 = sbr.rel (0) target = $region17
    $region16: #{down_projection_unit.1} parent=1 // pred_region
      _
    $region17: #{down_projection_unit.1} parent=1 // pred_fallthru
      _
    // Predicated region
    $region18: #{down_projection_unit.1} parent=1 // pred_check
      _
    $region19: #{down_projection_unit.1} parent=1 // pred_check_branch
      %31 = sbr.rel (0) target = $region21
    $region20: #{down_projection_unit.1} parent=1 // pred_region
      _
    $region21: #{down_projection_unit.1} parent=1 // pred_fallthru
      _
    // Predicated region
    $region22: #{down_projection_unit.1} parent=1 // pred_check
      _
    $region23: #{down_projection_unit.1} parent=1 // pred_check_branch
      %33 = sbr.rel (0) target = $region25
    $region24: #{down_projection_unit.1} parent=1 // pred_region
      _
    $region25: #{down_projection_unit.1} parent=1 // pred_fallthru
      _
    // Predicated region
    $region26: #{down_projection_unit.1} parent=1 // pred_check
      _
    $region27: #{down_projection_unit.1} parent=1 // pred_check_branch
      %35 = sbr.rel (0) target = $region29
    $region28: #{down_projection_unit.1} parent=1 // pred_region
      _
    $region29: #{down_projection_unit.1} parent=1 // pred_fallthru
      _
    // Predicated region
    $region30: #{down_projection_unit.1} parent=1 // pred_check
      _
    $region31: #{down_projection_unit.1} parent=1 // pred_check_branch
      %37 = sbr.rel (0) target = $region33
    $region32: #{down_projection_unit.1} parent=1 // pred_region
      _
    $region33: #{down_projection_unit.1} parent=1 // pred_fallthru
      _
    // Predicated region
    $region34: #{down_projection_unit.1} parent=1 // pred_check
      _
    $region35: #{down_projection_unit.1} parent=1 // pred_check_branch
      %39 = sbr.rel (0) target = $region37
    $region36: #{down_projection_unit.1} parent=1 // pred_region
      %40 = dma.done [#allocation3], 16
    $region37: #{down_projection_unit.1} parent=1 // pred_fallthru
      _
    %41 = sfence
    %s42 = sld [smem:[#allocation2]]
    %s43 = sld [smem:[#allocation2 + $0x1]]
    %s44 = sld [smem:[#allocation2 + $0x2]]
    %v45 = vld [vmem:[%s1] sm:$0xff]
    %v46 = vld [vmem:[%s1 + $0x8] sm:$0xff]
    %v47 = vld [vmem:[%s2] sm:$0xf]
    %v48 = vld [vmem:[%s3] sm:$0xf]
    %50 = vset.pattern.permute.xlu0 0
    %51 = vperm.xlu0 %50, %v48
    %v52 = vpop.permute.xlu0 %51
    %vm54 = vcmask 130048
    %v56 = vsel %vm54, %v47, 0
    %58 = vmatprep.subr.mxu0 0.0
    %59 = vmatpush1.msra.mxu0 %v45
    %60 = vmatprep.subr.mxu0 0.0
    %61 = vmatpush1.msra.mxu0 %v46
    %62 = vmatprep.subr.mxu0 0.0
    %63 = vmatpush1.msra.mxu0 0.0
    %64 = vmatprep.subr.mxu0 0.0
    %65 = vmatpush1.msra.mxu0 0.0
    %66 = vmatprep.subr.mxu0 0.0
    %67 = vmatpush1.msra.mxu0 0.0
    %68 = vmatprep.subr.mxu0 0.0
    %69 = vmatpush1.msra.mxu0 0.0
    %70 = vmatprep.subr.mxu0 0.0
    %71 = vmatpush1.msra.mxu0 0.0
    %72 = vmatprep.subr.mxu0 0.0
    %73 = vmatpush1.msra.mxu0 0.0
    %74 = vmatprep.subr.mxu0 0.0
    %75 = vmatpush1.msra.mxu0 0.0
    %76 = vmatprep.subr.mxu0 0.0
    %77 = vmatpush1.msra.mxu0 0.0
    %78 = vmatprep.subr.mxu0 0.0
    %79 = vmatpush1.msra.mxu0 0.0
    %80 = vmatprep.subr.mxu0 0.0
    %81 = vmatpush1.msra.mxu0 0.0
    %82 = vmatprep.subr.mxu0 0.0
    %83 = vmatpush1.msra.mxu0 0.0
    %84 = vmatprep.subr.mxu0 0.0
    %85 = vmatpush1.msra.mxu0 0.0
    %86 = vmatprep.subr.mxu0 0.0
    %87 = vmatpush1.msra.mxu0 0.0
    %88 = vmatprep.subr.mxu0 0.0
    %89 = vmatpush1.msra.mxu0 0.0
    %90 = vmatprep.subr.mxu0 0.0
    %91 = vmatpush1.msra.mxu0 0.0
    %92 = vmatprep.subr.mxu0 0.0
    %93 = vmatpush1.msra.mxu0 0.0
    %94 = vmatprep.subr.mxu0 0.0
    %95 = vmatpush1.msra.mxu0 0.0
    %96 = vmatprep.subr.mxu0 0.0
    %97 = vmatpush1.msra.mxu0 0.0
    %98 = vmatprep.subr.mxu0 0.0
    %99 = vmatpush1.msra.mxu0 0.0
    %100 = vmatprep.subr.mxu0 0.0
    %101 = vmatpush1.msra.mxu0 0.0
    %102 = vmatprep.subr.mxu0 0.0
    %103 = vmatpush1.msra.mxu0 0.0
    %104 = vmatprep.subr.mxu0 0.0
    %105 = vmatpush1.msra.mxu0 0.0
    %106 = vmatprep.subr.mxu0 0.0
    %107 = vmatpush1.msra.mxu0 0.0
    %108 = vmatprep.subr.mxu0 0.0
    %109 = vmatpush1.msra.mxu0 0.0
    %110 = vmatprep.subr.mxu0 0.0
    %111 = vmatpush1.msra.mxu0 0.0
    %112 = vmatprep.subr.mxu0 0.0
    %113 = vmatpush1.msra.mxu0 0.0
    %114 = vmatprep.subr.mxu0 0.0
    %115 = vmatpush1.msra.mxu0 0.0
    %116 = vmatprep.subr.mxu0 0.0
    %117 = vmatpush1.msra.mxu0 0.0
    %118 = vmatprep.subr.mxu0 0.0
    %119 = vmatpush1.msra.mxu0 0.0
    %120 = vmatprep.subr.mxu0 0.0
    %121 = vmatpush1.msra.mxu0 0.0
    %122 = vmatprep.mubr.f32.mxu0 0.0
    %123 = vmatmul.mubr.f32.gmra.mrb[0].mxu0 %v56
    %v124 = vpop.f32.mrb[0].mxu0
    %v125 = vadd.f32 %v52, %v124
    %v126 = vpop.f32.mrb[0].mxu0
    %127 = vdwg.mxu0
    %vm128 = vcmp.ge.f32.partialorder %v125, 0.0
    %v129 = vstv %s42
    %v130 = vmul.f32 %v129, %v125
    %v131 = vsel %vm128, %v125, %v130
    %v132 = vld [vmem:[%s4] sm:$0xff]
    %v133 = vld [vmem:[%s4 + $0x8] sm:$0xff]
    %v134 = vld [vmem:[%s5] sm:$0xff]
    %v135 = vld [vmem:[%s5 + $0x8] sm:$0xff]
    %137 = vset.pattern.permute.xlu0 0
    %138 = vperm.xlu0 %137, %v134
    %v139 = vpop.permute.xlu0 %138
    %142 = vset.pattern.permute.xlu0 0
    %143 = vperm.xlu0 %142, %v135
    %v144 = vpop.permute.xlu0 %143
    %vm146 = vcmask 31744
    %v148 = vsel %vm146, %v132, 0
    %v151 = vsel %vm146, %v133, 0
    %vm153 = vcmask 1043456
    %v155 = vsel %vm153, %v131, 0
    %157 = vmatprep.subr.mxu0 0.0
    %158 = vmatpush1.msra.mxu0 %v155
    %159 = vmatprep.subr.mxu0 0.0
    %160 = vmatpush1.msra.mxu0 0.0
    %161 = vmatprep.subr.mxu0 0.0
    %162 = vmatpush1.msra.mxu0 0.0
    %163 = vmatprep.subr.mxu0 0.0
    %164 = vmatpush1.msra.mxu0 0.0
    %165 = vmatprep.subr.mxu0 0.0
    %166 = vmatpush1.msra.mxu0 0.0
    %167 = vmatprep.subr.mxu0 0.0
    %168 = vmatpush1.msra.mxu0 0.0
    %169 = vmatprep.subr.mxu0 0.0
    %170 = vmatpush1.msra.mxu0 0.0
    %171 = vmatprep.subr.mxu0 0.0
    %172 = vmatpush1.msra.mxu0 0.0
    %173 = vmatprep.subr.mxu0 0.0
    %174 = vmatpush1.msra.mxu0 0.0
    %175 = vmatprep.subr.mxu0 0.0
    %176 = vmatpush1.msra.mxu0 0.0
    %177 = vmatprep.subr.mxu0 0.0
    %178 = vmatpush1.msra.mxu0 0.0
    %179 = vmatprep.subr.mxu0 0.0
    %180 = vmatpush1.msra.mxu0 0.0
    %181 = vmatprep.subr.mxu0 0.0
    %182 = vmatpush1.msra.mxu0 0.0
    %183 = vmatprep.subr.mxu0 0.0
    %184 = vmatpush1.msra.mxu0 0.0
    %185 = vmatprep.subr.mxu0 0.0
    %186 = vmatpush1.msra.mxu0 0.0
    %187 = vmatprep.subr.mxu0 0.0
    %188 = vmatpush1.msra.mxu0 0.0
    %189 = vmatprep.subr.mxu0 0.0
    %190 = vmatpush1.msra.mxu0 0.0
    %191 = vmatprep.subr.mxu0 0.0
    %192 = vmatpush1.msra.mxu0 0.0
    %193 = vmatprep.subr.mxu0 0.0
    %194 = vmatpush1.msra.mxu0 0.0
    %195 = vmatprep.subr.mxu0 0.0
    %196 = vmatpush1.msra.mxu0 0.0
    %197 = vmatprep.subr.mxu0 0.0
    %198 = vmatpush1.msra.mxu0 0.0
    %199 = vmatprep.subr.mxu0 0.0
    %200 = vmatpush1.msra.mxu0 0.0
    %201 = vmatprep.subr.mxu0 0.0
    %202 = vmatpush1.msra.mxu0 0.0
    %203 = vmatprep.subr.mxu0 0.0
    %204 = vmatpush1.msra.mxu0 0.0
    %205 = vmatprep.subr.mxu0 0.0
    %206 = vmatpush1.msra.mxu0 0.0
    %207 = vmatprep.subr.mxu0 0.0
    %208 = vmatpush1.msra.mxu0 0.0
    %209 = vmatprep.subr.mxu0 0.0
    %210 = vmatpush1.msra.mxu0 0.0
    %211 = vmatprep.subr.mxu0 0.0
    %212 = vmatpush1.msra.mxu0 0.0
    %213 = vmatprep.subr.mxu0 0.0
    %214 = vmatpush1.msra.mxu0 0.0
    %215 = vmatprep.subr.mxu0 0.0
    %216 = vmatpush1.msra.mxu0 0.0
    %217 = vmatprep.subr.mxu0 0.0
    %218 = vmatpush1.msra.mxu0 0.0
    %219 = vmatprep.subr.mxu0 0.0
    %220 = vmatpush1.msra.mxu0 0.0
    %221 = vmatprep.mubr.f32.mxu0 0.0
    %222 = vmatmul.mubr.f32.gmra.mrb[0].mxu0 %v148
    %v223 = vpop.f32.mrb[0].mxu0
    %v224 = vadd.f32 %v139, %v223
    %v225 = vpop.f32.mrb[0].mxu0
    %226 = vmatprep.mubr.f32.mxu0 0.0
    %227 = vmatmul.mubr.f32.gmra.mrb[0].mxu0 %v151
    %v228 = vpop.f32.mrb[0].mxu0
    %v229 = vadd.f32 %v144, %v228
    %v230 = vpop.f32.mrb[0].mxu0
    %231 = vdwg.mxu0
    %vm232 = vcmp.ge.f32.partialorder %v224, 0.0
    %vm233 = vcmp.ge.f32.partialorder %v229, 0.0
    %v234 = vstv %s43
    %v235 = vmul.f32 %v234, %v224
    %v236 = vmul.f32 %v234, %v229
    %v237 = vsel %vm232, %v224, %v235
    %v238 = vsel %vm233, %v229, %v236
    %v239 = vsub.f32 %v237, %v45
    %v240 = vsub.f32 %v238, %v46
    %v241 = vld [vmem:[%s6] sm:$0xf]
    %v242 = vld [vmem:[%s7] sm:$0xf]
    %244 = vset.pattern.permute.xlu0 0
    %245 = vperm.xlu0 %244, %v242
    %v246 = vpop.permute.xlu0 %245
    %v249 = vsel %vm54, %v241, 0
    %251 = vmatprep.subr.mxu0 0.0
    %252 = vmatpush1.msra.mxu0 %v239
    %253 = vmatprep.subr.mxu0 0.0
    %254 = vmatpush1.msra.mxu0 %v240
    %255 = vmatprep.subr.mxu0 0.0
    %256 = vmatpush1.msra.mxu0 0.0
    %257 = vmatprep.subr.mxu0 0.0
    %258 = vmatpush1.msra.mxu0 0.0
    %259 = vmatprep.subr.mxu0 0.0
    %260 = vmatpush1.msra.mxu0 0.0
    %261 = vmatprep.subr.mxu0 0.0
    %262 = vmatpush1.msra.mxu0 0.0
    %263 = vmatprep.subr.mxu0 0.0
    %264 = vmatpush1.msra.mxu0 0.0
    %265 = vmatprep.subr.mxu0 0.0
    %266 = vmatpush1.msra.mxu0 0.0
    %267 = vmatprep.subr.mxu0 0.0
    %268 = vmatpush1.msra.mxu0 0.0
    %269 = vmatprep.subr.mxu0 0.0
    %270 = vmatpush1.msra.mxu0 0.0
    %271 = vmatprep.subr.mxu0 0.0
    %272 = vmatpush1.msra.mxu0 0.0
    %273 = vmatprep.subr.mxu0 0.0
    %274 = vmatpush1.msra.mxu0 0.0
    %275 = vmatprep.subr.mxu0 0.0
    %276 = vmatpush1.msra.mxu0 0.0
    %277 = vmatprep.subr.mxu0 0.0
    %278 = vmatpush1.msra.mxu0 0.0
    %279 = vmatprep.subr.mxu0 0.0
    %280 = vmatpush1.msra.mxu0 0.0
    %281 = vmatprep.subr.mxu0 0.0
    %282 = vmatpush1.msra.mxu0 0.0
    %283 = vmatprep.subr.mxu0 0.0
    %284 = vmatpush1.msra.mxu0 0.0
    %285 = vmatprep.subr.mxu0 0.0
    %286 = vmatpush1.msra.mxu0 0.0
    %287 = vmatprep.subr.mxu0 0.0
    %288 = vmatpush1.msra.mxu0 0.0
    %289 = vmatprep.subr.mxu0 0.0
    %290 = vmatpush1.msra.mxu0 0.0
    %291 = vmatprep.subr.mxu0 0.0
    %292 = vmatpush1.msra.mxu0 0.0
    %293 = vmatprep.subr.mxu0 0.0
    %294 = vmatpush1.msra.mxu0 0.0
    %295 = vmatprep.subr.mxu0 0.0
    %296 = vmatpush1.msra.mxu0 0.0
    %297 = vmatprep.subr.mxu0 0.0
    %298 = vmatpush1.msra.mxu0 0.0
    %299 = vmatprep.subr.mxu0 0.0
    %300 = vmatpush1.msra.mxu0 0.0
    %301 = vmatprep.subr.mxu0 0.0
    %302 = vmatpush1.msra.mxu0 0.0
    %303 = vmatprep.subr.mxu0 0.0
    %304 = vmatpush1.msra.mxu0 0.0
    %305 = vmatprep.subr.mxu0 0.0
    %306 = vmatpush1.msra.mxu0 0.0
    %307 = vmatprep.subr.mxu0 0.0
    %308 = vmatpush1.msra.mxu0 0.0
    %309 = vmatprep.subr.mxu0 0.0
    %310 = vmatpush1.msra.mxu0 0.0
    %311 = vmatprep.subr.mxu0 0.0
    %312 = vmatpush1.msra.mxu0 0.0
    %313 = vmatprep.subr.mxu0 0.0
    %314 = vmatpush1.msra.mxu0 0.0
    %315 = vmatprep.mubr.f32.mxu0 0.0
    %316 = vmatmul.mubr.f32.gmra.mrb[0].mxu0 %v249
    %v317 = vpop.f32.mrb[0].mxu0
    %v318 = vadd.f32 %v246, %v317
    %v319 = vpop.f32.mrb[0].mxu0
    %320 = vdwg.mxu0
    %vm321 = vcmp.ge.f32.partialorder %v318, 0.0
    %v322 = vstv %s44
    %v323 = vmul.f32 %v322, %v318
    %v324 = vsel %vm321, %v318, %v323
    %v325 = vadd.f32 %v131, %v324
    %326 = vst [vmem:[%s8] sm:$0xf] %v325
    // Predicated region
    $region38: #{down_projection_unit.1} parent=1 // pred_check
      _
    $region39: #{down_projection_unit.1} parent=1 // pred_check_branch
      %328 = sbr.rel (0) target = $region41
    $region40: #{down_projection_unit.1} parent=1 // pred_region
      _
    $region41: #{down_projection_unit.1} parent=1 // pred_fallthru
      _
    // Predicated region
    $region42: #{down_projection_unit.1} parent=1 // pred_check
      _
    $region43: #{down_projection_unit.1} parent=1 // pred_check_branch
      %330 = sbr.rel (0) target = $region45
    $region44: #{down_projection_unit.1} parent=1 // pred_region
      _
    $region45: #{down_projection_unit.1} parent=1 // pred_fallthru
      _
    %331 = vsyncpa [#allocation3], 1

</llo_original>
